<compile_context>
chip_gen: v7x
topology: tpu7x:2x2x1
jax: 0.10.0
libtpu: 0.0.40
codegen_flags: <defaults>
</compile_context>

<pallas_src>
import functools

import numpy as np
import jax
import jax.numpy as jnp
from jax.experimental import pallas as pl
from jax.experimental.pallas import tpu as pltpu


def _round_up(x: int, m: int) -> int:
    return ((x + m - 1) // m) * m


# ----------------------------------------------------------------------------
# Fused kernel: one ensemble head, one batch tile, all layers.
# ----------------------------------------------------------------------------
def _ensemble_mlp_kernel(x_ref, *refs, num_layers: int, relu_flags: tuple):
    """refs = (w_0, b_0, w_1, b_1, ..., w_{L-1}, b_{L-1}, o_ref)

    w_l : (1, d_in, d_out)  bf16 weight tile of the current head
    b_l : (1, 1, d_out)     f32 bias (pre-reshaped for broadcast)
    o_ref : (1, tile_m, out_pad)   lane-dense output tile
    """
    o_ref = refs[-1]
    wb = refs[:-1]

    h = x_ref[...].astype(jnp.float32)                      # (tile_m, d_in)
    for l in range(num_layers):
        w = wb[2 * l][0]                                    # (d_in, d_out) bf16
        b = wb[2 * l + 1][0]                                # (1, d_out)   f32
        # bf16 MXU inputs, f32 accumulate; f32 epilogue on the VPU.
        y = jnp.dot(h.astype(w.dtype), w, preferred_element_type=jnp.float32) + b
        h = jnp.maximum(y, 0.0) if relu_flags[l] else y
    o_ref[0] = h.astype(o_ref.dtype)


# ----------------------------------------------------------------------------
# Wrapper: single pallas_call over grid (num_heads, batch_tiles).
# ----------------------------------------------------------------------------
def ensemble_mlp_pallas(x, layers, *, tile_m_max: int = 256):
    """x: (M, input_dim) f32.  layers: [(W(E,din,dout) bf16, b(E,1,dout) f32, relu)].

    Returns (E, M, out_pad) with the last layer's lane padding still present.
    """
    M, d_in = x.shape
    E = layers[0][0].shape[0]
    out_pad = layers[-1][0].shape[-1]
    num_layers = len(layers)
    relu_flags = tuple(bool(r) for (_, _, r) in layers)

    tile_m = min(_round_up(M, 8), tile_m_max)
    m_pad = _round_up(M, tile_m)
    if m_pad != M:
        x = jnp.pad(x, ((0, m_pad - M), (0, 0)))
    n_m = m_pad // tile_m

    in_specs = [pl.BlockSpec((tile_m, d_in), lambda e, m: (m, 0))]
    operands = [x]
    for (w, b, _) in layers:
        _, dwi, dwo = w.shape
        # Weight / bias blocks depend only on the head index -> stay resident
        # across all batch tiles of that head.
        in_specs.append(pl.BlockSpec((1, dwi, dwo), lambda e, m: (e, 0, 0)))
        in_specs.append(pl.BlockSpec((1, 1, dwo), lambda e, m: (e, 0, 0)))
        operands.extend([w, b])

    out_spec = pl.BlockSpec((1, tile_m, out_pad), lambda e, m: (e, m, 0))

    kernel = functools.partial(
        _ensemble_mlp_kernel, num_layers=num_layers, relu_flags=relu_flags
    )

    out = pl.pallas_call(
        kernel,
        out_shape=jax.ShapeDtypeStruct((E, m_pad, out_pad), x.dtype),
        grid_spec=pltpu.PrefetchScalarGridSpec(
            num_scalar_prefetch=0,
            grid=(E, n_m),
            in_specs=in_specs,
            out_specs=out_spec,
        ),
        compiler_params=pltpu.CompilerParams(
            dimension_semantics=("parallel", "parallel"),
        ),
    )(*operands)
    return out[:, :M, :]


# ----------------------------------------------------------------------------
# Parameter init (PyTorch-Linear-style U(-1/sqrt(fan_in), 1/sqrt(fan_in))),
# stacked over ensemble heads, weights stored (in, out) so y = x @ W + b.
# ----------------------------------------------------------------------------
def init_ensemble_mlp_params(key, input_dim, output_shapes, *, num_heads=5,
                             features=(256, 256, 256), learn_std=False,
                             weight_dtype=jnp.bfloat16):
    output_dim = sum(output_shapes.values())
    head_out = 2 * output_dim if learn_std else output_dim
    out_pad = _round_up(max(head_out, 1), 128)        # lane-dense final store

    dims = [input_dim] + list(features) + [head_out]
    layers = []
    for l in range(len(dims) - 1):
        d_in, d_out = dims[l], dims[l + 1]
        is_last = l == len(dims) - 2
        bound = 1.0 / np.sqrt(d_in)
        key, kw, kb = jax.random.split(key, 3)
        w = jax.random.uniform(kw, (num_heads, d_in, d_out), jnp.float32, -bound, bound)
        b = jax.random.uniform(kb, (num_heads, 1, d_out), jnp.float32, -bound, bound)
        if is_last and out_pad != d_out:
            w = jnp.pad(w, ((0, 0), (0, 0), (0, out_pad - d_out)))
            b = jnp.pad(b, ((0, 0), (0, 0), (0, out_pad - d_out)))
        layers.append((w.astype(weight_dtype), b, not is_last))

    return {
        "layers": layers,
        "output_shapes": dict(output_shapes),
        "num_heads": num_heads,
        "head_out": head_out,
        "out_pad": out_pad,
        "learn_std": learn_std,
    }


# ----------------------------------------------------------------------------
# EnsembleMLP.forward: kernel + dict assembly (matches the PyTorch module).
# ----------------------------------------------------------------------------
def ensemble_mlp_forward(x, params, *, min_std=1e-3, max_std=100.0):
    out = ensemble_mlp_pallas(x, params["layers"])          # (E, M, out_pad)
    out = out[:, :, :params["head_out"]]                    # strip lane padding
    out = jnp.transpose(out, (1, 2, 0))                     # (M, head_out, E)

    if params["learn_std"]:
        split_sizes = [2 * v for v in params["output_shapes"].values()]
    else:
        split_sizes = list(params["output_shapes"].values())
    idx = np.cumsum(split_sizes)[:-1].tolist()
    parts = jnp.split(out, idx, axis=-2)

    output_dict = {}
    if params["learn_std"]:
        for part, (k, v) in zip(parts, params["output_shapes"].items()):
            mean, log_std = part[..., :v, :], part[..., v:, :]
            std = jax.nn.softplus(log_std)
            std = jnp.clip(std, min_std, max_std)
            output_dict[k] = (mean, std)
    else:
        for part, k in zip(parts, params["output_shapes"].keys()):
            output_dict[k] = part
    return output_dict


if __name__ == "__main__":
    key = jax.random.PRNGKey(0)

    batch = 8
    input_dim = 16
    features = (128, 128, 128)
    num_heads = 5
    output_shapes = {"reward": 1, "next_obs": 7}   # total output_dim = 8
    learn_std = False

    key, kx, kp = jax.random.split(key, 3)
    x = jax.random.normal(kx, (batch, input_dim), jnp.float32)
    params = init_ensemble_mlp_params(
        kp, input_dim, output_shapes, num_heads=num_heads,
        features=features, learn_std=learn_std,
    )

    out_dict = ensemble_mlp_forward(x, params)
    out_dict = jax.block_until_ready(out_dict)

    # ----- reference in plain JAX (same bf16-weight / f32-accumulate math) ----
    h = jnp.broadcast_to(x[None], (num_heads,) + x.shape).astype(jnp.float32)
    for (w, b, relu) in params["layers"]:
        y = jnp.einsum("emk,ekn->emn", h.astype(w.dtype), w,
                       preferred_element_type=jnp.float32) + b
        h = jnp.maximum(y, 0.0) if relu else y
    ref = jnp.transpose(h[:, :, :params["head_out"]], (1, 2, 0))  # (M, out, E)

    offset = 0
    for k, v in output_shapes.items():
        got = out_dict[k]
        want = ref[:, offset:offset + v, :]
        assert got.shape == (batch, v, num_heads), (k, got.shape)
        assert jnp.allclose(got, want, atol=1e-3, rtol=1e-3), k
        offset += v

    print("KERNEL_OK")
</pallas_src>

<mosaic_0001>
module attributes {stable_mosaic.version = 11 : i64} {
  func.func @_ensemble_mlp_kernel(%arg0: i32, %arg1: i32, %arg2: memref<8x16xf32, #tpu.memory_space<vmem>>, %arg3: memref<1x16x128xbf16, #tpu.memory_space<vmem>>, %arg4: memref<1x1x128xf32, #tpu.memory_space<vmem>>, %arg5: memref<1x128x128xbf16, #tpu.memory_space<vmem>>, %arg6: memref<1x1x128xf32, #tpu.memory_space<vmem>>, %arg7: memref<1x128x128xbf16, #tpu.memory_space<vmem>>, %arg8: memref<1x1x128xf32, #tpu.memory_space<vmem>>, %arg9: memref<1x128x128xbf16, #tpu.memory_space<vmem>>, %arg10: memref<1x1x128xf32, #tpu.memory_space<vmem>>, %arg11: memref<1x8x128xf32, #tpu.memory_space<vmem>>) attributes {dimension_semantics = [#tpu.dimension_semantics<parallel>, #tpu.dimension_semantics<parallel>], iteration_bounds = array<i64: 5, 1>, scalar_prefetch = 0 : i64, scratch_operands = 0 : i64, tpu.core_type = #tpu.core_type<tc>, window_params = [{transform_indices = @transform_0, window_bounds = array<i64: 8, 16>}, {transform_indices = @transform_1, window_bounds = array<i64: 1, 16, 128>}, {transform_indices = @transform_2, window_bounds = array<i64: 1, 1, 128>}, {transform_indices = @transform_3, window_bounds = array<i64: 1, 128, 128>}, {transform_indices = @transform_4, window_bounds = array<i64: 1, 1, 128>}, {transform_indices = @transform_5, window_bounds = array<i64: 1, 128, 128>}, {transform_indices = @transform_6, window_bounds = array<i64: 1, 1, 128>}, {transform_indices = @transform_7, window_bounds = array<i64: 1, 128, 128>}, {transform_indices = @transform_8, window_bounds = array<i64: 1, 1, 128>}, {transform_indices = @transform_9, window_bounds = array<i64: 1, 8, 128>}]} {
    %c0 = arith.constant 0 : index
    %c0_0 = arith.constant 0 : index
    %0 = vector.load %arg2[%c0, %c0_0] : memref<8x16xf32, #tpu.memory_space<vmem>>, vector<8x16xf32>
    %c0_1 = arith.constant 0 : index
    %c0_2 = arith.constant 0 : index
    %c0_3 = arith.constant 0 : index
    %1 = vector.load %arg3[%c0_1, %c0_2, %c0_3] : memref<1x16x128xbf16, #tpu.memory_space<vmem>>, vector<1x16x128xbf16>
    %2 = vector.shape_cast %1 : vector<1x16x128xbf16> to vector<16x128xbf16>
    %c0_4 = arith.constant 0 : index
    %c0_5 = arith.constant 0 : index
    %c0_6 = arith.constant 0 : index
    %3 = vector.load %arg4[%c0_4, %c0_5, %c0_6] : memref<1x1x128xf32, #tpu.memory_space<vmem>>, vector<1x1x128xf32>
    %4 = vector.shape_cast %3 : vector<1x1x128xf32> to vector<1x128xf32>
    %5 = arith.truncf %0 : vector<8x16xf32> to vector<8x16xbf16>
    %cst = arith.constant dense<0.000000e+00> : vector<8x128xf32>
    %6 = tpu.matmul %5, %2, %cst {dimension_numbers = #tpu.dot_dimension_numbers<[1], [0], [0], [1], [0, 0, 1, 1], [], []>} : vector<8x16xbf16>, vector<16x128xbf16>, vector<8x128xf32> -> vector<8x128xf32>
    %7 = vector.broadcast %4 : vector<1x128xf32> to vector<8x128xf32>
    %8 = arith.addf %6, %7 : vector<8x128xf32>
    %cst_7 = arith.constant 0.000000e+00 : f32
    %9 = vector.broadcast %cst_7 : f32 to vector<8x128xf32>
    %10 = arith.maximumf %8, %9 : vector<8x128xf32>
    %c0_8 = arith.constant 0 : index
    %c0_9 = arith.constant 0 : index
    %c0_10 = arith.constant 0 : index
    %11 = vector.load %arg5[%c0_8, %c0_9, %c0_10] : memref<1x128x128xbf16, #tpu.memory_space<vmem>>, vector<1x128x128xbf16>
    %12 = vector.shape_cast %11 : vector<1x128x128xbf16> to vector<128x128xbf16>
    %c0_11 = arith.constant 0 : index
    %c0_12 = arith.constant 0 : index
    %c0_13 = arith.constant 0 : index
    %13 = vector.load %arg6[%c0_11, %c0_12, %c0_13] : memref<1x1x128xf32, #tpu.memory_space<vmem>>, vector<1x1x128xf32>
    %14 = vector.shape_cast %13 : vector<1x1x128xf32> to vector<1x128xf32>
    %15 = arith.truncf %10 : vector<8x128xf32> to vector<8x128xbf16>
    %cst_14 = arith.constant dense<0.000000e+00> : vector<8x128xf32>
    %16 = tpu.matmul %15, %12, %cst_14 {dimension_numbers = #tpu.dot_dimension_numbers<[1], [0], [0], [1], [0, 0, 1, 1], [], []>} : vector<8x128xbf16>, vector<128x128xbf16>, vector<8x128xf32> -> vector<8x128xf32>
    %17 = vector.broadcast %14 : vector<1x128xf32> to vector<8x128xf32>
    %18 = arith.addf %16, %17 : vector<8x128xf32>
    %cst_15 = arith.constant 0.000000e+00 : f32
    %19 = vector.broadcast %cst_15 : f32 to vector<8x128xf32>
    %20 = arith.maximumf %18, %19 : vector<8x128xf32>
    %c0_16 = arith.constant 0 : index
    %c0_17 = arith.constant 0 : index
    %c0_18 = arith.constant 0 : index
    %21 = vector.load %arg7[%c0_16, %c0_17, %c0_18] : memref<1x128x128xbf16, #tpu.memory_space<vmem>>, vector<1x128x128xbf16>
    %22 = vector.shape_cast %21 : vector<1x128x128xbf16> to vector<128x128xbf16>
    %c0_19 = arith.constant 0 : index
    %c0_20 = arith.constant 0 : index
    %c0_21 = arith.constant 0 : index
    %23 = vector.load %arg8[%c0_19, %c0_20, %c0_21] : memref<1x1x128xf32, #tpu.memory_space<vmem>>, vector<1x1x128xf32>
    %24 = vector.shape_cast %23 : vector<1x1x128xf32> to vector<1x128xf32>
    %25 = arith.truncf %20 : vector<8x128xf32> to vector<8x128xbf16>
    %cst_22 = arith.constant dense<0.000000e+00> : vector<8x128xf32>
    %26 = tpu.matmul %25, %22, %cst_22 {dimension_numbers = #tpu.dot_dimension_numbers<[1], [0], [0], [1], [0, 0, 1, 1], [], []>} : vector<8x128xbf16>, vector<128x128xbf16>, vector<8x128xf32> -> vector<8x128xf32>
    %27 = vector.broadcast %24 : vector<1x128xf32> to vector<8x128xf32>
    %28 = arith.addf %26, %27 : vector<8x128xf32>
    %cst_23 = arith.constant 0.000000e+00 : f32
    %29 = vector.broadcast %cst_23 : f32 to vector<8x128xf32>
    %30 = arith.maximumf %28, %29 : vector<8x128xf32>
    %c0_24 = arith.constant 0 : index
    %c0_25 = arith.constant 0 : index
    %c0_26 = arith.constant 0 : index
    %31 = vector.load %arg9[%c0_24, %c0_25, %c0_26] : memref<1x128x128xbf16, #tpu.memory_space<vmem>>, vector<1x128x128xbf16>
    %32 = vector.shape_cast %31 : vector<1x128x128xbf16> to vector<128x128xbf16>
    %c0_27 = arith.constant 0 : index
    %c0_28 = arith.constant 0 : index
    %c0_29 = arith.constant 0 : index
    %33 = vector.load %arg10[%c0_27, %c0_28, %c0_29] : memref<1x1x128xf32, #tpu.memory_space<vmem>>, vector<1x1x128xf32>
    %34 = vector.shape_cast %33 : vector<1x1x128xf32> to vector<1x128xf32>
    %35 = arith.truncf %30 : vector<8x128xf32> to vector<8x128xbf16>
    %cst_30 = arith.constant dense<0.000000e+00> : vector<8x128xf32>
    %36 = tpu.matmul %35, %32, %cst_30 {dimension_numbers = #tpu.dot_dimension_numbers<[1], [0], [0], [1], [0, 0, 1, 1], [], []>} : vector<8x128xbf16>, vector<128x128xbf16>, vector<8x128xf32> -> vector<8x128xf32>
    %37 = vector.broadcast %34 : vector<1x128xf32> to vector<8x128xf32>
    %38 = arith.addf %36, %37 : vector<8x128xf32>
    %c0_31 = arith.constant 0 : index
    %c0_32 = arith.constant 0 : index
    %c0_33 = arith.constant 0 : index
    %39 = vector.load %arg11[%c0_31, %c0_32, %c0_33] : memref<1x8x128xf32, #tpu.memory_space<vmem>>, vector<1x8x128xf32>
    %40 = vector.shape_cast %39 : vector<1x8x128xf32> to vector<8x128xf32>
    %41 = vector.shape_cast %38 : vector<8x128xf32> to vector<1x8x128xf32>
    tpu.vector_store %arg11[%c0_31, %c0_32, %c0_33], %41 {strides = array<i32>} : memref<1x8x128xf32, #tpu.memory_space<vmem>>, vector<1x8x128xf32>,
    return
  }
  func.func @transform_0(%arg0: i32, %arg1: i32) -> (i32, i32) {
    %c0_i32 = arith.constant 0 : i32
    %c0_i32_0 = arith.constant 0 : i32
    return %arg1, %c0_i32 : i32, i32
  }
  func.func @transform_1(%arg0: i32, %arg1: i32) -> (i32, i32, i32) {
    %c0_i32 = arith.constant 0 : i32
    %c0_i32_0 = arith.constant 0 : i32
    %c0_i32_1 = arith.constant 0 : i32
    return %arg0, %c0_i32, %c0_i32_0 : i32, i32, i32
  }
  func.func @transform_2(%arg0: i32, %arg1: i32) -> (i32, i32, i32) {
    %c0_i32 = arith.constant 0 : i32
    %c0_i32_0 = arith.constant 0 : i32
    %c0_i32_1 = arith.constant 0 : i32
    return %arg0, %c0_i32, %c0_i32_0 : i32, i32, i32
  }
  func.func @transform_3(%arg0: i32, %arg1: i32) -> (i32, i32, i32) {
    %c0_i32 = arith.constant 0 : i32
    %c0_i32_0 = arith.constant 0 : i32
    %c0_i32_1 = arith.constant 0 : i32
    return %arg0, %c0_i32, %c0_i32_0 : i32, i32, i32
  }
  func.func @transform_4(%arg0: i32, %arg1: i32) -> (i32, i32, i32) {
    %c0_i32 = arith.constant 0 : i32
    %c0_i32_0 = arith.constant 0 : i32
    %c0_i32_1 = arith.constant 0 : i32
    return %arg0, %c0_i32, %c0_i32_0 : i32, i32, i32
  }
  func.func @transform_5(%arg0: i32, %arg1: i32) -> (i32, i32, i32) {
    %c0_i32 = arith.constant 0 : i32
    %c0_i32_0 = arith.constant 0 : i32
    %c0_i32_1 = arith.constant 0 : i32
    return %arg0, %c0_i32, %c0_i32_0 : i32, i32, i32
  }
  func.func @transform_6(%arg0: i32, %arg1: i32) -> (i32, i32, i32) {
    %c0_i32 = arith.constant 0 : i32
    %c0_i32_0 = arith.constant 0 : i32
    %c0_i32_1 = arith.constant 0 : i32
    return %arg0, %c0_i32, %c0_i32_0 : i32, i32, i32
  }
  func.func @transform_7(%arg0: i32, %arg1: i32) -> (i32, i32, i32) {
    %c0_i32 = arith.constant 0 : i32
    %c0_i32_0 = arith.constant 0 : i32
    %c0_i32_1 = arith.constant 0 : i32
    return %arg0, %c0_i32, %c0_i32_0 : i32, i32, i32
  }
  func.func @transform_8(%arg0: i32, %arg1: i32) -> (i32, i32, i32) {
    %c0_i32 = arith.constant 0 : i32
    %c0_i32_0 = arith.constant 0 : i32
    %c0_i32_1 = arith.constant 0 : i32
    return %arg0, %c0_i32, %c0_i32_0 : i32, i32, i32
  }
  func.func @transform_9(%arg0: i32, %arg1: i32) -> (i32, i32, i32) {
    %c0_i32 = arith.constant 0 : i32
    %c0_i32_0 = arith.constant 0 : i32
    return %arg0, %arg1, %c0_i32 : i32, i32, i32
  }
}

</mosaic_0001>

<llo_original>
// kernel: tpu_custom_call.1
$region0: #{tpu_custom_call.1}
  #allocation0 [shape = 'u32[]', space=smem, size = 0x4, offset = 0x4, fixed_abs, tag = 'smem constant byte address 0x4 - core index']
  #allocation1 [shape = 'u32[144,128]{1,0:T(1,128)}', space=vmem, size = 0x12000, scoped, tag = 'internal scratch']
  %s0 = inlined_call_operand.hbm [shape: f32[8,16], index: 0, kind: input, shape index: {}]
  %s1 = inlined_call_operand.hbm [shape: bf16[5,16,128], index: 1, kind: input, shape index: {}]
  %s2 = inlined_call_operand.vmem [shape: f32[5,1,128], index: 2, kind: input, shape index: {}]
  %s3 = inlined_call_operand.hbm [shape: bf16[5,128,128], index: 3, kind: input, shape index: {}]
  %s4 = inlined_call_operand.vmem [shape: f32[5,1,128], index: 4, kind: input, shape index: {}]
  %s5 = inlined_call_operand.hbm [shape: bf16[5,128,128], index: 5, kind: input, shape index: {}]
  %s6 = inlined_call_operand.vmem [shape: f32[5,1,128], index: 6, kind: input, shape index: {}]
  %s7 = inlined_call_operand.hbm [shape: bf16[5,128,128], index: 7, kind: input, shape index: {}]
  %s8 = inlined_call_operand.vmem [shape: f32[5,1,128], index: 8, kind: input, shape index: {}]
  %s9 = inlined_call_operand.hbm [shape: f32[5,8,128], index: 9, kind: output, shape index: {}]
  %s10 = sld [smem:[#allocation0]]
  $region89: #{tpu_custom_call.1} parent=0
    _
  %s12 = ssub.s32 1, %s10
  %s13 = scalar_select 0, %s12, %s10
  $region1: #{tpu_custom_call.1} parent=0
    #allocation2 [shape = 'u8[4096]{0}', space=vmem, size = 0x1000, scoped, tag = 'input window, operand 0, single buffered']
    #allocation3 [shape = 's32[2]{0}', space=sflag, size = 0x8, scoped, tag = 'scoped memory for tpu_custom_call.1']
    #allocation4 [shape = 's32[2]{0}', space=sflag, size = 0x8, scoped, tag = 'scoped memory for tpu_custom_call.1']
    #allocation5 [shape = 'u8[8192]{0}', space=vmem, size = 0x2000, scoped, tag = 'input window, operand 1']
    #allocation6 [shape = 's32[2]{0}', space=sflag, size = 0x8, scoped, tag = 'scoped memory for tpu_custom_call.1']
    #allocation7 [shape = 'u8[65536]{0}', space=vmem, size = 0x10000, scoped, tag = 'input window, operand 3']
    #allocation8 [shape = 'u8[65536]{0}', space=vmem, size = 0x10000, scoped, tag = 'input window, operand 5']
    #allocation9 [shape = 's32[2]{0}', space=sflag, size = 0x8, scoped, tag = 'scoped memory for tpu_custom_call.1']
    #allocation10 [shape = 'u8[65536]{0}', space=vmem, size = 0x10000, scoped, tag = 'input window, operand 7']
    #allocation11 [shape = 'u8[8192]{0}', space=vmem, size = 0x2000, scoped, tag = 'output window, operand 0']
    %14 = vsyncpa [#allocation3], 0
    %15 = vsyncpa [#allocation6], 0
    %s16 = scalar_lea.sflag [#allocation6], 1
    %17 = vsyncpa %s16, 0
    %18 = vsyncpa [#allocation9], 0
    %s19 = scalar_lea.sflag [#allocation9], 1
    %20 = vsyncpa %s19, 0
    %21 = vsyncpa [#allocation4], 0
    %s22 = scalar_lea.sflag [#allocation4], 1
    %23 = vsyncpa %s22, 0
    loop: start=0, step=1, limit=7
    $region2: #{tpu_custom_call.1} parent=1 // loop_pre_header
      _
    $region3: #{tpu_custom_call.1} parent=1 // loop_header
      %s25 = sphi 0, %s29
      %p26 = scmp.ge.s32.totalorder %s25, 7
      %s32 = sphi 0, %s44
      %s33 = sphi 0, %s40
      %s34 = sphi 0, %s32
      %s35 = sphi 0, %s33
      %s36 = sphi 0, %s34
      %s37 = sphi 0, %s35
      %s47 = sphi 0, %s49
      %s50 = sphi 0, %s47
      %s51 = sphi 0, %s50
      %s67 = sphi 0, %s51
      %s73 = sphi 0, %s75
      %s76 = sphi 0, %s73
      %s77 = sphi 0, %s76
      %s93 = sphi 0, %s77
      %s99 = sphi 0, %s101
      %s102 = sphi 0, %s99
      %s103 = sphi 0, %s102
      %s119 = sphi 0, %s103
      %s125 = sphi 0, %s127
      %s128 = sphi 0, %s125
      %s129 = sphi 0, %s128
      %s145 = sphi 0, %s129
      %s151 = sphi 0, %s153
      %s154 = sphi 0, %s151
      %s155 = sphi 0, %s154
      %s171 = sphi 0, %s155
      %s177 = sphi 0, %s179
      %s180 = sphi 0, %s177
      %s181 = sphi 0, %s180
      %s197 = sphi 0, %s181
      %s203 = sphi 0, %s205
      %s206 = sphi 0, %s203
      %s207 = sphi 0, %s206
      %s223 = sphi 0, %s207
      %s229 = sphi 0, %s231
      %s232 = sphi 0, %s229
      %s233 = sphi 0, %s232
      %s249 = sphi 0, %s233
      %s255 = sphi 0, %s257
      %s258 = sphi 0, %s255
      %s259 = sphi 0, %s258
      %s275 = sphi 0, %s259
      %s283 = sphi 0, %s285
      %s286 = sphi 0, %s283
      %s287 = sphi 0, %s286
      %s303 = sphi 0, %s287
    $region4: #{tpu_custom_call.1} parent=1 // loop_header_branch
      %28 = sbr.rel (%p26) target = $region8
    $region5: #{tpu_custom_call.1} parent=1 // loop_body
      %s30 = ssub.s32 %s25, 1
      %s31 = ssub.s32 %s25, 2
      %s38 = sadd.s32 1, %s33
      %p39 = scmp.ge.s32.totalorder %s38, 1
      %s40 = scalar_select %p39, 0, %s38
      %s41 = sadd.s32 1, %s32
      %s42 = scalar_select %p39, %s41, %s32
      %p43 = scmp.ge.s32.totalorder %s42, 5
      %s44 = scalar_select %p43, 0, %s42
      %s45 = ssub.s32 %s33, %s40
      %p46 = scmp.eq.s32.totalorder %s45, 0
      %s48 = sadd.s32 %s47, 1
      %s49 = scalar_select %p46, %s47, %s48
      %p52 = pneg %p46
      %p53 = scmp.eq.s32.totalorder %s25, 4
      %p54 = por %p52, %p53
      %p55 = scmp.ne.s32.totalorder %s47, %s50
      %p56 = scmp.eq.s32.totalorder %s25, 0
      %p57 = por %p55, %p56
      %p58 = scmp.ne.s32.totalorder %s47, %s50
      %p59 = scmp.eq.s32.totalorder %s30, 4
      %p60 = por %p58, %p59
      %p61 = scmp.ne.s32.totalorder %s50, %s51
      %p62 = scmp.eq.s32.totalorder %s30, 0
      %p63 = por %p61, %p62
      %p64 = scmp.ne.s32.totalorder %s50, %s51
      %p65 = scmp.eq.s32.totalorder %s31, 4
      %p66 = por %p64, %p65
      %p68 = scmp.ne.s32.totalorder %s51, %s67
      %p69 = scmp.eq.s32.totalorder %s31, 0
      %p70 = por %p68, %p69
      %s71 = ssub.s32 %s32, %s44
      %p72 = scmp.eq.s32.totalorder %s71, 0
      %s74 = sadd.s32 %s73, 1
      %s75 = scalar_select %p72, %s73, %s74
      %p78 = pneg %p72
      %p79 = scmp.eq.s32.totalorder %s25, 4
      %p80 = por %p78, %p79
      %p81 = scmp.ne.s32.totalorder %s73, %s76
      %p82 = scmp.eq.s32.totalorder %s25, 0
      %p83 = por %p81, %p82
      %p84 = scmp.ne.s32.totalorder %s73, %s76
      %p85 = scmp.eq.s32.totalorder %s30, 4
      %p86 = por %p84, %p85
      %p87 = scmp.ne.s32.totalorder %s76, %s77
      %p88 = scmp.eq.s32.totalorder %s30, 0
      %p89 = por %p87, %p88
      %p90 = scmp.ne.s32.totalorder %s76, %s77
      %p91 = scmp.eq.s32.totalorder %s31, 4
      %p92 = por %p90, %p91
      %p94 = scmp.ne.s32.totalorder %s77, %s93
      %p95 = scmp.eq.s32.totalorder %s31, 0
      %p96 = por %p94, %p95
      %s97 = ssub.s32 %s32, %s44
      %p98 = scmp.eq.s32.totalorder %s97, 0
      %s100 = sadd.s32 %s99, 1
      %s101 = scalar_select %p98, %s99, %s100
      %p104 = pneg %p98
      %p105 = scmp.eq.s32.totalorder %s25, 4
      %p106 = por %p104, %p105
      %p107 = scmp.ne.s32.totalorder %s99, %s102
      %p108 = scmp.eq.s32.totalorder %s25, 0
      %p109 = por %p107, %p108
      %p110 = scmp.ne.s32.totalorder %s99, %s102
      %p111 = scmp.eq.s32.totalorder %s30, 4
      %p112 = por %p110, %p111
      %p113 = scmp.ne.s32.totalorder %s102, %s103
      %p114 = scmp.eq.s32.totalorder %s30, 0
      %p115 = por %p113, %p114
      %p116 = scmp.ne.s32.totalorder %s102, %s103
      %p117 = scmp.eq.s32.totalorder %s31, 4
      %p118 = por %p116, %p117
      %p120 = scmp.ne.s32.totalorder %s103, %s119
      %p121 = scmp.eq.s32.totalorder %s31, 0
      %p122 = por %p120, %p121
      %s123 = ssub.s32 %s32, %s44
      %p124 = scmp.eq.s32.totalorder %s123, 0
      %s126 = sadd.s32 %s125, 1
      %s127 = scalar_select %p124, %s125, %s126
      %p130 = pneg %p124
      %p131 = scmp.eq.s32.totalorder %s25, 4
      %p132 = por %p130, %p131
      %p133 = scmp.ne.s32.totalorder %s125, %s128
      %p134 = scmp.eq.s32.totalorder %s25, 0
      %p135 = por %p133, %p134
      %p136 = scmp.ne.s32.totalorder %s125, %s128
      %p137 = scmp.eq.s32.totalorder %s30, 4
      %p138 = por %p136, %p137
      %p139 = scmp.ne.s32.totalorder %s128, %s129
      %p140 = scmp.eq.s32.totalorder %s30, 0
      %p141 = por %p139, %p140
      %p142 = scmp.ne.s32.totalorder %s128, %s129
      %p143 = scmp.eq.s32.totalorder %s31, 4
      %p144 = por %p142, %p143
      %p146 = scmp.ne.s32.totalorder %s129, %s145
      %p147 = scmp.eq.s32.totalorder %s31, 0
      %p148 = por %p146, %p147
      %s149 = ssub.s32 %s32, %s44
      %p150 = scmp.eq.s32.totalorder %s149, 0
      %s152 = sadd.s32 %s151, 1
      %s153 = scalar_select %p150, %s151, %s152
      %p156 = pneg %p150
      %p157 = scmp.eq.s32.totalorder %s25, 4
      %p158 = por %p156, %p157
      %p159 = scmp.ne.s32.totalorder %s151, %s154
      %p160 = scmp.eq.s32.totalorder %s25, 0
      %p161 = por %p159, %p160
      %p162 = scmp.ne.s32.totalorder %s151, %s154
      %p163 = scmp.eq.s32.totalorder %s30, 4
      %p164 = por %p162, %p163
      %p165 = scmp.ne.s32.totalorder %s154, %s155
      %p166 = scmp.eq.s32.totalorder %s30, 0
      %p167 = por %p165, %p166
      %p168 = scmp.ne.s32.totalorder %s154, %s155
      %p169 = scmp.eq.s32.totalorder %s31, 4
      %p170 = por %p168, %p169
      %p172 = scmp.ne.s32.totalorder %s155, %s171
      %p173 = scmp.eq.s32.totalorder %s31, 0
      %p174 = por %p172, %p173
      %s175 = ssub.s32 %s32, %s44
      %p176 = scmp.eq.s32.totalorder %s175, 0
      %s178 = sadd.s32 %s177, 1
      %s179 = scalar_select %p176, %s177, %s178
      %p182 = pneg %p176
      %p183 = scmp.eq.s32.totalorder %s25, 4
      %p184 = por %p182, %p183
      %p185 = scmp.ne.s32.totalorder %s177, %s180
      %p186 = scmp.eq.s32.totalorder %s25, 0
      %p187 = por %p185, %p186
      %p188 = scmp.ne.s32.totalorder %s177, %s180
      %p189 = scmp.eq.s32.totalorder %s30, 4
      %p190 = por %p188, %p189
      %p191 = scmp.ne.s32.totalorder %s180, %s181
      %p192 = scmp.eq.s32.totalorder %s30, 0
      %p193 = por %p191, %p192
      %p194 = scmp.ne.s32.totalorder %s180, %s181
      %p195 = scmp.eq.s32.totalorder %s31, 4
      %p196 = por %p194, %p195
      %p198 = scmp.ne.s32.totalorder %s181, %s197
      %p199 = scmp.eq.s32.totalorder %s31, 0
      %p200 = por %p198, %p199
      %s201 = ssub.s32 %s32, %s44
      %p202 = scmp.eq.s32.totalorder %s201, 0
      %s204 = sadd.s32 %s203, 1
      %s205 = scalar_select %p202, %s203, %s204
      %p208 = pneg %p202
      %p209 = scmp.eq.s32.totalorder %s25, 4
      %p210 = por %p208, %p209
      %p211 = scmp.ne.s32.totalorder %s203, %s206
      %p212 = scmp.eq.s32.totalorder %s25, 0
      %p213 = por %p211, %p212
      %p214 = scmp.ne.s32.totalorder %s203, %s206
      %p215 = scmp.eq.s32.totalorder %s30, 4
      %p216 = por %p214, %p215
      %p217 = scmp.ne.s32.totalorder %s206, %s207
      %p218 = scmp.eq.s32.totalorder %s30, 0
      %p219 = por %p217, %p218
      %p220 = scmp.ne.s32.totalorder %s206, %s207
      %p221 = scmp.eq.s32.totalorder %s31, 4
      %p222 = por %p220, %p221
      %p224 = scmp.ne.s32.totalorder %s207, %s223
      %p225 = scmp.eq.s32.totalorder %s31, 0
      %p226 = por %p224, %p225
      %s227 = ssub.s32 %s32, %s44
      %p228 = scmp.eq.s32.totalorder %s227, 0
      %s230 = sadd.s32 %s229, 1
      %s231 = scalar_select %p228, %s229, %s230
      %p234 = pneg %p228
      %p235 = scmp.eq.s32.totalorder %s25, 4
      %p236 = por %p234, %p235
      %p237 = scmp.ne.s32.totalorder %s229, %s232
      %p238 = scmp.eq.s32.totalorder %s25, 0
      %p239 = por %p237, %p238
      %p240 = scmp.ne.s32.totalorder %s229, %s232
      %p241 = scmp.eq.s32.totalorder %s30, 4
      %p242 = por %p240, %p241
      %p243 = scmp.ne.s32.totalorder %s232, %s233
      %p244 = scmp.eq.s32.totalorder %s30, 0
      %p245 = por %p243, %p244
      %p246 = scmp.ne.s32.totalorder %s232, %s233
      %p247 = scmp.eq.s32.totalorder %s31, 4
      %p248 = por %p246, %p247
      %p250 = scmp.ne.s32.totalorder %s233, %s249
      %p251 = scmp.eq.s32.totalorder %s31, 0
      %p252 = por %p250, %p251
      %s253 = ssub.s32 %s32, %s44
      %p254 = scmp.eq.s32.totalorder %s253, 0
      %s256 = sadd.s32 %s255, 1
      %s257 = scalar_select %p254, %s255, %s256
      %p260 = pneg %p254
      %p261 = scmp.eq.s32.totalorder %s25, 4
      %p262 = por %p260, %p261
      %p263 = scmp.ne.s32.totalorder %s255, %s258
      %p264 = scmp.eq.s32.totalorder %s25, 0
      %p265 = por %p263, %p264
      %p266 = scmp.ne.s32.totalorder %s255, %s258
      %p267 = scmp.eq.s32.totalorder %s30, 4
      %p268 = por %p266, %p267
      %p269 = scmp.ne.s32.totalorder %s258, %s259
      %p270 = scmp.eq.s32.totalorder %s30, 0
      %p271 = por %p269, %p270
      %p272 = scmp.ne.s32.totalorder %s258, %s259
      %p273 = scmp.eq.s32.totalorder %s31, 4
      %p274 = por %p272, %p273
      %p276 = scmp.ne.s32.totalorder %s259, %s275
      %p277 = scmp.eq.s32.totalorder %s31, 0
      %p278 = por %p276, %p277
      %s279 = ssub.s32 %s32, %s44
      %s280 = ssub.s32 %s33, %s40
      %s281 = sor.u32 %s279, %s280
      %p282 = scmp.eq.s32.totalorder %s281, 0
      %s284 = sadd.s32 %s283, 1
      %s285 = scalar_select %p282, %s283, %s284
      %p288 = pneg %p282
      %p289 = scmp.eq.s32.totalorder %s25, 4
      %p290 = por %p288, %p289
      %p291 = scmp.ne.s32.totalorder %s283, %s286
      %p292 = scmp.eq.s32.totalorder %s25, 0
      %p293 = por %p291, %p292
      %p294 = scmp.ne.s32.totalorder %s283, %s286
      %p295 = scmp.eq.s32.totalorder %s30, 4
      %p296 = por %p294, %p295
      %p297 = scmp.ne.s32.totalorder %s286, %s287
      %p298 = scmp.eq.s32.totalorder %s30, 0
      %p299 = por %p297, %p298
      %p300 = scmp.ne.s32.totalorder %s286, %s287
      %p301 = scmp.eq.s32.totalorder %s31, 4
      %p302 = por %p300, %p301
      %p304 = scmp.ne.s32.totalorder %s287, %s303
      %p305 = scmp.eq.s32.totalorder %s31, 0
      %p306 = por %p304, %p305
      %p307 = scmp.le.s32.totalorder 1, %s25
      %p308 = scmp.lt.s32.totalorder %s25, 6
      %p309 = pnand %p307, %p308
      %p310 = pneg %p309
      // Predicated region
      $region9: #{tpu_custom_call.1} parent=5 // pred_check
        _
      $region10: #{tpu_custom_call.1} parent=5 // pred_check_branch
        %312 = sbr.rel (%p309) target = $region12
      $region11: #{tpu_custom_call.1} parent=5 // pred_region
        %s313 = ssub.s32 %s25, 1
        // Predicated region
        $region13: #{tpu_custom_call.1} parent=11 // pred_check
          %p314 = pneg %p63
        $region14: #{tpu_custom_call.1} parent=11 // pred_check_branch
          %316 = sbr.rel (%p314) target = $region16
        $region15: #{tpu_custom_call.1} parent=11 // pred_region
          %s318 = ssub.s32 128, 128
          %319 = vsyncadd [#allocation3], %s318
          %s320 = smul.addr %s35, 128
          %s321 = scalar_lea.hbm %s0, %s320
          %s323 = sshll.u32 [#allocation2], 4
          %s324 = int_to_ptr.vmem [resolvable:$true] %s323
          %326 = dma.hbm_to_vmem [thread:$0]  %s321, 128, %s324, [#allocation3]
        $region16: #{tpu_custom_call.1} parent=11 // pred_fallthru
          _
      $region12: #{tpu_custom_call.1} parent=5 // pred_fallthru
        _
      %p327 = scmp.lt.s32.totalorder %s25, 5
      // Predicated region
      $region17: #{tpu_custom_call.1} parent=5 // pred_check
        %p328 = pneg %p327
      $region18: #{tpu_custom_call.1} parent=5 // pred_check_branch
        %330 = sbr.rel (%p328) target = $region20
      $region19: #{tpu_custom_call.1} parent=5 // pred_region
        // Predicated region
        $region21: #{tpu_custom_call.1} parent=19 // pred_check
          %p331 = pneg %p83
        $region22: #{tpu_custom_call.1} parent=19 // pred_check_branch
          %333 = sbr.rel (%p331) target = $region24
        $region23: #{tpu_custom_call.1} parent=19 // pred_region
          %s334 = sand.u32 %s25, 1
          %s335 = scalar_lea.sflag [#allocation6], %s334
          %s336 = sand.u32 %s73, 1
          %s337 = smul.addr %s336, 8
          %s338 = scalar_lea.vmem [#allocation5], %s337
          %s340 = ssub.s32 128, 128
          %341 = vsyncadd %s335, %s340
          %s342 = smul.addr %s32, 2
          %s343 = smul.addr %s342, 64
          %s344 = scalar_lea.hbm %s1, %s343
          %s345 = sshll.u32 %s338, 4
          %s346 = int_to_ptr.vmem [resolvable:$true] %s345
          %351 = dma.hbm_to_vmem [thread:$0]  %s344, 128, %s346, %s335, 64, 64, 4
        $region24: #{tpu_custom_call.1} parent=19 // pred_fallthru
          _
        // Predicated region
        $region25: #{tpu_custom_call.1} parent=19 // pred_check
          %p352 = pneg %p109
        $region26: #{tpu_custom_call.1} parent=19 // pred_check_branch
          %354 = sbr.rel (%p352) target = $region28
        $region27: #{tpu_custom_call.1} parent=19 // pred_region
          %p355 = scmp.lt.s32.totalorder %s32, 4
          %s356 = scalar_select %p355, %s32, 4
          %s357 = scalar_lea.vmem %s2, %s356
        $region28: #{tpu_custom_call.1} parent=19 // pred_fallthru
          _
        // Predicated region
        $region29: #{tpu_custom_call.1} parent=19 // pred_check
          %p358 = pneg %p135
        $region30: #{tpu_custom_call.1} parent=19 // pred_check_branch
          %360 = sbr.rel (%p358) target = $region32
        $region31: #{tpu_custom_call.1} parent=19 // pred_region
          %s361 = sand.u32 %s25, 1
          %s362 = scalar_lea.sflag [#allocation6], %s361
          %s363 = sand.u32 %s125, 1
          %s364 = smul.addr %s363, 64
          %s365 = scalar_lea.vmem [#allocation7], %s364
          %s367 = ssub.s32 1024, 1024
          %368 = vsyncadd %s362, %s367
          %s369 = smul.addr %s32, 16
          %s370 = smul.addr %s369, 64
          %s371 = scalar_lea.hbm %s3, %s370
          %s372 = sshll.u32 %s365, 4
          %s373 = int_to_ptr.vmem [resolvable:$true] %s372
          %378 = dma.hbm_to_vmem [thread:$0]  %s371, 1024, %s373, %s362, 64, 64, 4
        $region32: #{tpu_custom_call.1} parent=19 // pred_fallthru
          _
        // Predicated region
        $region33: #{tpu_custom_call.1} parent=19 // pred_check
          %p379 = pneg %p161
        $region34: #{tpu_custom_call.1} parent=19 // pred_check_branch
          %381 = sbr.rel (%p379) target = $region36
        $region35: #{tpu_custom_call.1} parent=19 // pred_region
          %p382 = scmp.lt.s32.totalorder %s32, 4
          %s383 = scalar_select %p382, %s32, 4
          %s384 = scalar_lea.vmem %s4, %s383
        $region36: #{tpu_custom_call.1} parent=19 // pred_fallthru
          _
        // Predicated region
        $region37: #{tpu_custom_call.1} parent=19 // pred_check
          %p385 = pneg %p187
        $region38: #{tpu_custom_call.1} parent=19 // pred_check_branch
          %387 = sbr.rel (%p385) target = $region40
        $region39: #{tpu_custom_call.1} parent=19 // pred_region
          %s388 = sand.u32 %s25, 1
          %s389 = scalar_lea.sflag [#allocation9], %s388
          %s390 = sand.u32 %s177, 1
          %s391 = smul.addr %s390, 64
          %s392 = scalar_lea.vmem [#allocation8], %s391
          %s394 = ssub.s32 1024, 1024
          %395 = vsyncadd %s389, %s394
          %s396 = smul.addr %s32, 16
          %s397 = smul.addr %s396, 64
          %s398 = scalar_lea.hbm %s5, %s397
          %s399 = sshll.u32 %s392, 4
          %s400 = int_to_ptr.vmem [resolvable:$true] %s399
          %405 = dma.hbm_to_vmem [thread:$0]  %s398, 1024, %s400, %s389, 64, 64, 4
        $region40: #{tpu_custom_call.1} parent=19 // pred_fallthru
          _
        // Predicated region
        $region41: #{tpu_custom_call.1} parent=19 // pred_check
          %p406 = pneg %p213
        $region42: #{tpu_custom_call.1} parent=19 // pred_check_branch
          %408 = sbr.rel (%p406) target = $region44
        $region43: #{tpu_custom_call.1} parent=19 // pred_region
          %p409 = scmp.lt.s32.totalorder %s32, 4
          %s410 = scalar_select %p409, %s32, 4
          %s411 = scalar_lea.vmem %s6, %s410
        $region44: #{tpu_custom_call.1} parent=19 // pred_fallthru
          _
        // Predicated region
        $region45: #{tpu_custom_call.1} parent=19 // pred_check
          %p412 = pneg %p239
        $region46: #{tpu_custom_call.1} parent=19 // pred_check_branch
          %414 = sbr.rel (%p412) target = $region48
        $region47: #{tpu_custom_call.1} parent=19 // pred_region
          %s415 = sand.u32 %s25, 1
          %s416 = scalar_lea.sflag [#allocation9], %s415
          %s417 = sand.u32 %s229, 1
          %s418 = smul.addr %s417, 64
          %s419 = scalar_lea.vmem [#allocation10], %s418
          %s421 = ssub.s32 1024, 1024
          %422 = vsyncadd %s416, %s421
          %s423 = smul.addr %s32, 16
          %s424 = smul.addr %s423, 64
          %s425 = scalar_lea.hbm %s7, %s424
          %s426 = sshll.u32 %s419, 4
          %s427 = int_to_ptr.vmem [resolvable:$true] %s426
          %432 = dma.hbm_to_vmem [thread:$0]  %s425, 1024, %s427, %s416, 64, 64, 4
        $region48: #{tpu_custom_call.1} parent=19 // pred_fallthru
          _
        // Predicated region
        $region49: #{tpu_custom_call.1} parent=19 // pred_check
          %p433 = pneg %p265
        $region50: #{tpu_custom_call.1} parent=19 // pred_check_branch
          %435 = sbr.rel (%p433) target = $region52
        $region51: #{tpu_custom_call.1} parent=19 // pred_region
          %p436 = scmp.lt.s32.totalorder %s32, 4
          %s437 = scalar_select %p436, %s32, 4
          %s438 = scalar_lea.vmem %s8, %s437
        $region52: #{tpu_custom_call.1} parent=19 // pred_fallthru
          _
      $region20: #{tpu_custom_call.1} parent=5 // pred_fallthru
        _
      %p439 = scmp.le.s32.totalorder 1, %s25
      %p440 = scmp.lt.s32.totalorder %s25, 6
      %p441 = pnand %p439, %p440
      %p442 = pneg %p441
      // Predicated region
      $region53: #{tpu_custom_call.1} parent=5 // pred_check
        _
      $region54: #{tpu_custom_call.1} parent=5 // pred_check_branch
        %444 = sbr.rel (%p441) target = $region56
      $region55: #{tpu_custom_call.1} parent=5 // pred_region
        %s445 = ssub.s32 %s25, 1
        // Predicated region
        $region57: #{tpu_custom_call.1} parent=55 // pred_check
          %p446 = pneg %p63
        $region58: #{tpu_custom_call.1} parent=55 // pred_check_branch
          %448 = sbr.rel (%p446) target = $region60
        $region59: #{tpu_custom_call.1} parent=55 // pred_region
          %449 = dma.done [#allocation3], 128
        $region60: #{tpu_custom_call.1} parent=55 // pred_fallthru
          _
        %s450 = sand.u32 %s30, 1
        %s451 = scalar_lea.sflag [#allocation6], %s450
        %s452 = sand.u32 %s76, 1
        %s453 = smul.addr %s452, 8
        %s454 = scalar_lea.vmem [#allocation5], %s453
        // Predicated region
        $region61: #{tpu_custom_call.1} parent=55 // pred_check
          %p455 = pneg %p89
        $region62: #{tpu_custom_call.1} parent=55 // pred_check_branch
          %457 = sbr.rel (%p455) target = $region64
        $region63: #{tpu_custom_call.1} parent=55 // pred_region
          %458 = dma.done %s451, 128
        $region64: #{tpu_custom_call.1} parent=55 // pred_fallthru
          _
        %s459 = sand.u32 %s30, 1
        %s460 = scalar_lea.sflag [#allocation6], %s459
        %s461 = sand.u32 %s128, 1
        %s462 = smul.addr %s461, 64
        %s463 = scalar_lea.vmem [#allocation7], %s462
        // Predicated region
        $region65: #{tpu_custom_call.1} parent=55 // pred_check
          %p464 = pneg %p141
        $region66: #{tpu_custom_call.1} parent=55 // pred_check_branch
          %466 = sbr.rel (%p464) target = $region68
        $region67: #{tpu_custom_call.1} parent=55 // pred_region
          %467 = dma.done %s460, 1024
        $region68: #{tpu_custom_call.1} parent=55 // pred_fallthru
          _
        %s468 = sand.u32 %s30, 1
        %s469 = scalar_lea.sflag [#allocation9], %s468
        %s470 = sand.u32 %s180, 1
        %s471 = smul.addr %s470, 64
        %s472 = scalar_lea.vmem [#allocation8], %s471
        // Predicated region
        $region69: #{tpu_custom_call.1} parent=55 // pred_check
          %p473 = pneg %p193
        $region70: #{tpu_custom_call.1} parent=55 // pred_check_branch
          %475 = sbr.rel (%p473) target = $region72
        $region71: #{tpu_custom_call.1} parent=55 // pred_region
          %476 = dma.done %s469, 1024
        $region72: #{tpu_custom_call.1} parent=55 // pred_fallthru
          _
        %s477 = sand.u32 %s30, 1
        %s478 = scalar_lea.sflag [#allocation9], %s477
        %s479 = sand.u32 %s232, 1
        %s480 = smul.addr %s479, 64
        %s481 = scalar_lea.vmem [#allocation10], %s480
        // Predicated region
        $region73: #{tpu_custom_call.1} parent=55 // pred_check
          %p482 = pneg %p245
        $region74: #{tpu_custom_call.1} parent=55 // pred_check_branch
          %484 = sbr.rel (%p482) target = $region76
        $region75: #{tpu_custom_call.1} parent=55 // pred_region
          %485 = dma.done %s478, 1024
        $region76: #{tpu_custom_call.1} parent=55 // pred_fallthru
          _
        %p486 = pneg %p63
        %p487 = pneg %p60
        %s488 = sand.u32 %s30, 1
        %s489 = scalar_lea.sflag [#allocation6], %s488
        %s490 = sand.u32 %s76, 1
        %s491 = smul.addr %s490, 8
        %s492 = scalar_lea.vmem [#allocation5], %s491
        %p493 = pneg %p89
        %p494 = pneg %p86
        %p495 = scmp.lt.s32.totalorder %s34, 4
        %s496 = scalar_select %p495, %s34, 4
        %s497 = scalar_lea.vmem %s2, %s496
        %p498 = pneg %p115
        %p499 = pneg %p112
        %s500 = sand.u32 %s30, 1
        %s501 = scalar_lea.sflag [#allocation6], %s500
        %s502 = sand.u32 %s128, 1
        %s503 = smul.addr %s502, 64
        %s504 = scalar_lea.vmem [#allocation7], %s503
        %p505 = pneg %p141
        %p506 = pneg %p138
        %p507 = scmp.lt.s32.totalorder %s34, 4
        %s508 = scalar_select %p507, %s34, 4
        %s509 = scalar_lea.vmem %s4, %s508
        %p510 = pneg %p167
        %p511 = pneg %p164
        %s512 = sand.u32 %s30, 1
        %s513 = scalar_lea.sflag [#allocation9], %s512
        %s514 = sand.u32 %s180, 1
        %s515 = smul.addr %s514, 64
        %s516 = scalar_lea.vmem [#allocation8], %s515
        %p517 = pneg %p193
        %p518 = pneg %p190
        %p519 = scmp.lt.s32.totalorder %s34, 4
        %s520 = scalar_select %p519, %s34, 4
        %s521 = scalar_lea.vmem %s6, %s520
        %p522 = pneg %p219
        %p523 = pneg %p216
        %s524 = sand.u32 %s30, 1
        %s525 = scalar_lea.sflag [#allocation9], %s524
        %s526 = sand.u32 %s232, 1
        %s527 = smul.addr %s526, 64
        %s528 = scalar_lea.vmem [#allocation10], %s527
        %p529 = pneg %p245
        %p530 = pneg %p242
        %p531 = scmp.lt.s32.totalorder %s34, 4
        %s532 = scalar_select %p531, %s34, 4
        %s533 = scalar_lea.vmem %s8, %s532
        %p534 = pneg %p271
        %p535 = pneg %p268
        %p536 = pneg %p299
        %p537 = pneg %p296
        %s538 = sand.u32 %s286, 1
        %s539 = scalar_lea.sflag [#allocation4], %s538
        %s540 = sand.u32 %s286, 1
        %s541 = smul.addr %s540, 8
        %s542 = scalar_lea.vmem [#allocation11], %s541
        %p543 = scmp.lt.s32.totalorder %s34, 4
        %s544 = scalar_select %p543, %s34, 4
        %s545 = scalar_lea.vmem %s2, %s544
        %p546 = scmp.lt.s32.totalorder %s34, 4
        %s547 = scalar_select %p546, %s34, 4
        %s548 = scalar_lea.vmem %s4, %s547
        %p549 = scmp.lt.s32.totalorder %s34, 4
        %s550 = scalar_select %p549, %s34, 4
        %s551 = scalar_lea.vmem %s6, %s550
        %p552 = scmp.lt.s32.totalorder %s34, 4
        %s553 = scalar_select %p552, %s34, 4
        %s554 = scalar_lea.vmem %s8, %s553
        %v556 = vld [vmem:[#allocation2] sm:$0xff]
        %v557 = vld [vmem:[%s454] sm:$0xf]
        %v558 = vld [vmem:[%s454 + $0x4] sm:$0xf]
        %v559 = vld [vmem:[%s545] sm:$0x1]
        %v560 = vpack.c.bf16 %v556, %v556
        %v562 = vlaneseq
        %v563 = vshrl.u32 %v562, 7
        %v564 = vsub.s32 0, %v563
        %v565 = vrot.slane %v559, %v564
        %v569 = vunpack.c.l.b16 %v557
        %v570 = vunpack.c.l.b16 %v558
        %v571 = vpack.c.b16 %v570, %v569
        %vm573 = vcmask 130048
        %v575 = vsel %vm573, %v560, 0
        %577 = vmatprep.subr.bf16.mxu0 0
        %578 = vmatpush1.bf16.msra.mxu0 %v571
        %579 = vmatprep.subr.bf16.mxu0 0
        %580 = vmatpush1.bf16.msra.mxu0 0
        %581 = vmatprep.subr.bf16.mxu0 0
        %582 = vmatpush1.bf16.msra.mxu0 0
        %583 = vmatprep.subr.bf16.mxu0 0
        %584 = vmatpush1.bf16.msra.mxu0 0
        %585 = vmatprep.subr.bf16.mxu0 0
        %586 = vmatpush1.bf16.msra.mxu0 0
        %587 = vmatprep.subr.bf16.mxu0 0
        %588 = vmatpush1.bf16.msra.mxu0 0
        %589 = vmatprep.subr.bf16.mxu0 0
        %590 = vmatpush1.bf16.msra.mxu0 0
        %591 = vmatprep.subr.bf16.mxu0 0
        %592 = vmatpush1.bf16.msra.mxu0 0
        %593 = vmatprep.subr.bf16.mxu0 0
        %594 = vmatpush1.bf16.msra.mxu0 0
        %595 = vmatprep.subr.bf16.mxu0 0
        %596 = vmatpush1.bf16.msra.mxu0 0
        %597 = vmatprep.subr.bf16.mxu0 0
        %598 = vmatpush1.bf16.msra.mxu0 0
        %599 = vmatprep.subr.bf16.mxu0 0
        %600 = vmatpush1.bf16.msra.mxu0 0
        %601 = vmatprep.subr.bf16.mxu0 0
        %602 = vmatpush1.bf16.msra.mxu0 0
        %603 = vmatprep.subr.bf16.mxu0 0
        %604 = vmatpush1.bf16.msra.mxu0 0
        %605 = vmatprep.subr.bf16.mxu0 0
        %606 = vmatpush1.bf16.msra.mxu0 0
        %607 = vmatprep.subr.bf16.mxu0 0
        %608 = vmatpush1.bf16.msra.mxu0 0
        %609 = vmatprep.mubr.bf16.mxu0 0
        %610 = vmatmul.mubr.bf16.gmra.mrb[0].mxu0 %v575
        %v611 = vpop.f32.mrb[0].mxu0
        %v612 = vadd.f32 %v565, %v611
        %v613 = vpop.f32.mrb[0].mxu0
        %v614 = vpop.f32.mrb[0].mxu0
        %v615 = vpop.f32.mrb[0].mxu0
        %616 = vdwg.mxu0
        %v617 = vmax.f32 %v612, 0.0
        %v618 = vld [vmem:[%s463] sm:$0xf]
        %v619 = vld [vmem:[%s463 + $0x4] sm:$0xf]
        %v620 = vld [vmem:[%s463 + $0x8] sm:$0xf]
        %v621 = vld [vmem:[%s463 + $0xc] sm:$0xf]
        %v622 = vld [vmem:[%s463 + $0x10] sm:$0xf]
        %v623 = vld [vmem:[%s463 + $0x14] sm:$0xf]
        %v624 = vld [vmem:[%s463 + $0x18] sm:$0xf]
        %v625 = vld [vmem:[%s463 + $0x1c] sm:$0xf]
        %v626 = vld [vmem:[%s463 + $0x20] sm:$0xf]
        %v627 = vld [vmem:[%s463 + $0x24] sm:$0xf]
        %v628 = vld [vmem:[%s463 + $0x28] sm:$0xf]
        %v629 = vld [vmem:[%s463 + $0x2c] sm:$0xf]
        %v630 = vld [vmem:[%s463 + $0x30] sm:$0xf]
        %v631 = vld [vmem:[%s463 + $0x34] sm:$0xf]
        %v632 = vld [vmem:[%s463 + $0x38] sm:$0xf]
        %v633 = vld [vmem:[%s463 + $0x3c] sm:$0xf]
        %v634 = vld [vmem:[%s548] sm:$0x1]
        %v635 = vpack.c.bf16 %v617, %v617
        %v637 = vlaneseq
        %v638 = vshrl.u32 %v637, 7
        %v639 = vsub.s32 0, %v638
        %v640 = vrot.slane %v634, %v639
        %v658 = vunpack.c.l.b16 %v618
        %v659 = vunpack.c.l.b16 %v619
        %v660 = vunpack.c.l.b16 %v620
        %v661 = vunpack.c.l.b16 %v621
        %v662 = vunpack.c.l.b16 %v622
        %v663 = vunpack.c.l.b16 %v623
        %v664 = vunpack.c.l.b16 %v624
        %v665 = vunpack.c.l.b16 %v625
        %v666 = vunpack.c.l.b16 %v626
        %v667 = vunpack.c.l.b16 %v627
        %v668 = vunpack.c.l.b16 %v628
        %v669 = vunpack.c.l.b16 %v629
        %v670 = vunpack.c.l.b16 %v630
        %v671 = vunpack.c.l.b16 %v631
        %v672 = vunpack.c.l.b16 %v632
        %v673 = vunpack.c.l.b16 %v633
        %v674 = vpack.c.b16 %v659, %v658
        %v675 = vpack.c.b16 %v661, %v660
        %v676 = vpack.c.b16 %v663, %v662
        %v677 = vpack.c.b16 %v665, %v664
        %v678 = vpack.c.b16 %v667, %v666
        %v679 = vpack.c.b16 %v669, %v668
        %v680 = vpack.c.b16 %v671, %v670
        %v681 = vpack.c.b16 %v673, %v672
        %690 = vmatprep.subr.bf16.mxu0 0
        %691 = vmatpush1.bf16.msra.mxu0 %v674
        %692 = vmatprep.subr.bf16.mxu0 0
        %693 = vmatpush1.bf16.msra.mxu0 %v675
        %694 = vmatprep.subr.bf16.mxu0 0
        %695 = vmatpush1.bf16.msra.mxu0 %v676
        %696 = vmatprep.subr.bf16.mxu0 0
        %697 = vmatpush1.bf16.msra.mxu0 %v677
        %698 = vmatprep.subr.bf16.mxu0 0
        %699 = vmatpush1.bf16.msra.mxu0 %v678
        %700 = vmatprep.subr.bf16.mxu0 0
        %701 = vmatpush1.bf16.msra.mxu0 %v679
        %702 = vmatprep.subr.bf16.mxu0 0
        %703 = vmatpush1.bf16.msra.mxu0 %v680
        %704 = vmatprep.subr.bf16.mxu0 0
        %705 = vmatpush1.bf16.msra.mxu0 %v681
        %706 = vmatprep.subr.bf16.mxu0 0
        %707 = vmatpush1.bf16.msra.mxu0 0
        %708 = vmatprep.subr.bf16.mxu0 0
        %709 = vmatpush1.bf16.msra.mxu0 0
        %710 = vmatprep.subr.bf16.mxu0 0
        %711 = vmatpush1.bf16.msra.mxu0 0
        %712 = vmatprep.subr.bf16.mxu0 0
        %713 = vmatpush1.bf16.msra.mxu0 0
        %714 = vmatprep.subr.bf16.mxu0 0
        %715 = vmatpush1.bf16.msra.mxu0 0
        %716 = vmatprep.subr.bf16.mxu0 0
        %717 = vmatpush1.bf16.msra.mxu0 0
        %718 = vmatprep.subr.bf16.mxu0 0
        %719 = vmatpush1.bf16.msra.mxu0 0
        %720 = vmatprep.subr.bf16.mxu0 0
        %721 = vmatpush1.bf16.msra.mxu0 0
        %722 = vmatprep.mubr.bf16.mxu0 0
        %723 = vmatmul.mubr.bf16.gmra.mrb[0].mxu0 %v635
        %v724 = vpop.f32.mrb[0].mxu0
        %v725 = vadd.f32 %v640, %v724
        %v726 = vpop.f32.mrb[0].mxu0
        %v727 = vpop.f32.mrb[0].mxu0
        %v728 = vpop.f32.mrb[0].mxu0
        %729 = vdwg.mxu0
        %v730 = vmax.f32 %v725, 0.0
        %v731 = vld [vmem:[%s472] sm:$0xf]
        %v732 = vld [vmem:[%s472 + $0x4] sm:$0xf]
        %v733 = vld [vmem:[%s472 + $0x8] sm:$0xf]
        %v734 = vld [vmem:[%s472 + $0xc] sm:$0xf]
        %v735 = vld [vmem:[%s472 + $0x10] sm:$0xf]
        %v736 = vld [vmem:[%s472 + $0x14] sm:$0xf]
        %v737 = vld [vmem:[%s472 + $0x18] sm:$0xf]
        %v738 = vld [vmem:[%s472 + $0x1c] sm:$0xf]
        %v739 = vld [vmem:[%s472 + $0x20] sm:$0xf]
        %v740 = vld [vmem:[%s472 + $0x24] sm:$0xf]
        %v741 = vld [vmem:[%s472 + $0x28] sm:$0xf]
        %v742 = vld [vmem:[%s472 + $0x2c] sm:$0xf]
        %v743 = vld [vmem:[%s472 + $0x30] sm:$0xf]
        %v744 = vld [vmem:[%s472 + $0x34] sm:$0xf]
        %v745 = vld [vmem:[%s472 + $0x38] sm:$0xf]
        %v746 = vld [vmem:[%s472 + $0x3c] sm:$0xf]
        %v747 = vld [vmem:[%s551] sm:$0x1]
        %v748 = vpack.c.bf16 %v730, %v730
        %v750 = vlaneseq
        %v751 = vshrl.u32 %v750, 7
        %v752 = vsub.s32 0, %v751
        %v753 = vrot.slane %v747, %v752
        %v771 = vunpack.c.l.b16 %v731
        %v772 = vunpack.c.l.b16 %v732
        %v773 = vunpack.c.l.b16 %v733
        %v774 = vunpack.c.l.b16 %v734
        %v775 = vunpack.c.l.b16 %v735
        %v776 = vunpack.c.l.b16 %v736
        %v777 = vunpack.c.l.b16 %v737
        %v778 = vunpack.c.l.b16 %v738
        %v779 = vunpack.c.l.b16 %v739
        %v780 = vunpack.c.l.b16 %v740
        %v781 = vunpack.c.l.b16 %v741
        %v782 = vunpack.c.l.b16 %v742
        %v783 = vunpack.c.l.b16 %v743
        %v784 = vunpack.c.l.b16 %v744
        %v785 = vunpack.c.l.b16 %v745
        %v786 = vunpack.c.l.b16 %v746
        %v787 = vpack.c.b16 %v772, %v771
        %v788 = vpack.c.b16 %v774, %v773
        %v789 = vpack.c.b16 %v776, %v775
        %v790 = vpack.c.b16 %v778, %v777
        %v791 = vpack.c.b16 %v780, %v779
        %v792 = vpack.c.b16 %v782, %v781
        %v793 = vpack.c.b16 %v784, %v783
        %v794 = vpack.c.b16 %v786, %v785
        %803 = vmatprep.subr.bf16.mxu0 0
        %804 = vmatpush1.bf16.msra.mxu0 %v787
        %805 = vmatprep.subr.bf16.mxu0 0
        %806 = vmatpush1.bf16.msra.mxu0 %v788
        %807 = vmatprep.subr.bf16.mxu0 0
        %808 = vmatpush1.bf16.msra.mxu0 %v789
        %809 = vmatprep.subr.bf16.mxu0 0
        %810 = vmatpush1.bf16.msra.mxu0 %v790
        %811 = vmatprep.subr.bf16.mxu0 0
        %812 = vmatpush1.bf16.msra.mxu0 %v791
        %813 = vmatprep.subr.bf16.mxu0 0
        %814 = vmatpush1.bf16.msra.mxu0 %v792
        %815 = vmatprep.subr.bf16.mxu0 0
        %816 = vmatpush1.bf16.msra.mxu0 %v793
        %817 = vmatprep.subr.bf16.mxu0 0
        %818 = vmatpush1.bf16.msra.mxu0 %v794
        %819 = vmatprep.subr.bf16.mxu0 0
        %820 = vmatpush1.bf16.msra.mxu0 0
        %821 = vmatprep.subr.bf16.mxu0 0
        %822 = vmatpush1.bf16.msra.mxu0 0
        %823 = vmatprep.subr.bf16.mxu0 0
        %824 = vmatpush1.bf16.msra.mxu0 0
        %825 = vmatprep.subr.bf16.mxu0 0
        %826 = vmatpush1.bf16.msra.mxu0 0
        %827 = vmatprep.subr.bf16.mxu0 0
        %828 = vmatpush1.bf16.msra.mxu0 0
        %829 = vmatprep.subr.bf16.mxu0 0
        %830 = vmatpush1.bf16.msra.mxu0 0
        %831 = vmatprep.subr.bf16.mxu0 0
        %832 = vmatpush1.bf16.msra.mxu0 0
        %833 = vmatprep.subr.bf16.mxu0 0
        %834 = vmatpush1.bf16.msra.mxu0 0
        %835 = vmatprep.mubr.bf16.mxu0 0
        %836 = vmatmul.mubr.bf16.gmra.mrb[0].mxu0 %v748
        %v837 = vpop.f32.mrb[0].mxu0
        %v838 = vadd.f32 %v753, %v837
        %v839 = vpop.f32.mrb[0].mxu0
        %v840 = vpop.f32.mrb[0].mxu0
        %v841 = vpop.f32.mrb[0].mxu0
        %842 = vdwg.mxu0
        %v843 = vmax.f32 %v838, 0.0
        %v844 = vld [vmem:[%s481] sm:$0xf]
        %v845 = vld [vmem:[%s481 + $0x4] sm:$0xf]
        %v846 = vld [vmem:[%s481 + $0x8] sm:$0xf]
        %v847 = vld [vmem:[%s481 + $0xc] sm:$0xf]
        %v848 = vld [vmem:[%s481 + $0x10] sm:$0xf]
        %v849 = vld [vmem:[%s481 + $0x14] sm:$0xf]
        %v850 = vld [vmem:[%s481 + $0x18] sm:$0xf]
        %v851 = vld [vmem:[%s481 + $0x1c] sm:$0xf]
        %v852 = vld [vmem:[%s481 + $0x20] sm:$0xf]
        %v853 = vld [vmem:[%s481 + $0x24] sm:$0xf]
        %v854 = vld [vmem:[%s481 + $0x28] sm:$0xf]
        %v855 = vld [vmem:[%s481 + $0x2c] sm:$0xf]
        %v856 = vld [vmem:[%s481 + $0x30] sm:$0xf]
        %v857 = vld [vmem:[%s481 + $0x34] sm:$0xf]
        %v858 = vld [vmem:[%s481 + $0x38] sm:$0xf]
        %v859 = vld [vmem:[%s481 + $0x3c] sm:$0xf]
        %v860 = vld [vmem:[%s554] sm:$0x1]
        %v861 = vpack.c.bf16 %v843, %v843
        %v863 = vlaneseq
        %v864 = vshrl.u32 %v863, 7
        %v865 = vsub.s32 0, %v864
        %v866 = vrot.slane %v860, %v865
        %v884 = vunpack.c.l.b16 %v844
        %v885 = vunpack.c.l.b16 %v845
        %v886 = vunpack.c.l.b16 %v846
        %v887 = vunpack.c.l.b16 %v847
        %v888 = vunpack.c.l.b16 %v848
        %v889 = vunpack.c.l.b16 %v849
        %v890 = vunpack.c.l.b16 %v850
        %v891 = vunpack.c.l.b16 %v851
        %v892 = vunpack.c.l.b16 %v852
        %v893 = vunpack.c.l.b16 %v853
        %v894 = vunpack.c.l.b16 %v854
        %v895 = vunpack.c.l.b16 %v855
        %v896 = vunpack.c.l.b16 %v856
        %v897 = vunpack.c.l.b16 %v857
        %v898 = vunpack.c.l.b16 %v858
        %v899 = vunpack.c.l.b16 %v859
        %v900 = vpack.c.b16 %v885, %v884
        %v901 = vpack.c.b16 %v887, %v886
        %v902 = vpack.c.b16 %v889, %v888
        %v903 = vpack.c.b16 %v891, %v890
        %v904 = vpack.c.b16 %v893, %v892
        %v905 = vpack.c.b16 %v895, %v894
        %v906 = vpack.c.b16 %v897, %v896
        %v907 = vpack.c.b16 %v899, %v898
        %916 = vmatprep.subr.bf16.mxu0 0
        %917 = vmatpush1.bf16.msra.mxu0 %v900
        %918 = vmatprep.subr.bf16.mxu0 0
        %919 = vmatpush1.bf16.msra.mxu0 %v901
        %920 = vmatprep.subr.bf16.mxu0 0
        %921 = vmatpush1.bf16.msra.mxu0 %v902
        %922 = vmatprep.subr.bf16.mxu0 0
        %923 = vmatpush1.bf16.msra.mxu0 %v903
        %924 = vmatprep.subr.bf16.mxu0 0
        %925 = vmatpush1.bf16.msra.mxu0 %v904
        %926 = vmatprep.subr.bf16.mxu0 0
        %927 = vmatpush1.bf16.msra.mxu0 %v905
        %928 = vmatprep.subr.bf16.mxu0 0
        %929 = vmatpush1.bf16.msra.mxu0 %v906
        %930 = vmatprep.subr.bf16.mxu0 0
        %931 = vmatpush1.bf16.msra.mxu0 %v907
        %932 = vmatprep.subr.bf16.mxu0 0
        %933 = vmatpush1.bf16.msra.mxu0 0
        %934 = vmatprep.subr.bf16.mxu0 0
        %935 = vmatpush1.bf16.msra.mxu0 0
        %936 = vmatprep.subr.bf16.mxu0 0
        %937 = vmatpush1.bf16.msra.mxu0 0
        %938 = vmatprep.subr.bf16.mxu0 0
        %939 = vmatpush1.bf16.msra.mxu0 0
        %940 = vmatprep.subr.bf16.mxu0 0
        %941 = vmatpush1.bf16.msra.mxu0 0
        %942 = vmatprep.subr.bf16.mxu0 0
        %943 = vmatpush1.bf16.msra.mxu0 0
        %944 = vmatprep.subr.bf16.mxu0 0
        %945 = vmatpush1.bf16.msra.mxu0 0
        %946 = vmatprep.subr.bf16.mxu0 0
        %947 = vmatpush1.bf16.msra.mxu0 0
        %948 = vmatprep.mubr.bf16.mxu0 0
        %949 = vmatmul.mubr.bf16.gmra.mrb[0].mxu0 %v861
        %v950 = vpop.f32.mrb[0].mxu0
        %v951 = vadd.f32 %v866, %v950
        %v952 = vpop.f32.mrb[0].mxu0
        %v953 = vpop.f32.mrb[0].mxu0
        %v954 = vpop.f32.mrb[0].mxu0
        %955 = vdwg.mxu0
        %956 = vst [vmem:[%s542] sm:$0xff] %v951
        %s957 = sand.u32 %s286, 1
        %s958 = scalar_lea.sflag [#allocation4], %s957
        %s959 = sand.u32 %s286, 1
        %s960 = smul.addr %s959, 8
        %s961 = scalar_lea.vmem [#allocation11], %s960
        // Predicated region
        $region77: #{tpu_custom_call.1} parent=55 // pred_check
          %p962 = pneg %p296
        $region78: #{tpu_custom_call.1} parent=55 // pred_check_branch
          %964 = sbr.rel (%p962) target = $region80
        $region79: #{tpu_custom_call.1} parent=55 // pred_region
          %s966 = ssub.s32 128, 128
          %967 = vsyncadd %s958, %s966
          %s968 = sadd.s32 %s35, %s34
          %s969 = smul.addr %s968, 128
          %s970 = scalar_lea.hbm %s9, %s969
          %s972 = sshll.u32 %s961, 4
          %s973 = int_to_ptr.vmem [resolvable:$true] %s972
          %975 = dma.vmem_to_hbm [thread:$0]  %s973, 128, %s970, %s958
        $region80: #{tpu_custom_call.1} parent=55 // pred_fallthru
          _
      $region56: #{tpu_custom_call.1} parent=5 // pred_fallthru
        _
      %p976 = scmp.le.s32.totalorder 2, %s25
      // Predicated region
      $region81: #{tpu_custom_call.1} parent=5 // pred_check
        %p977 = pneg %p976
      $region82: #{tpu_custom_call.1} parent=5 // pred_check_branch
        %979 = sbr.rel (%p977) target = $region84
      $region83: #{tpu_custom_call.1} parent=5 // pred_region
        %s980 = ssub.s32 %s25, 2
        // Predicated region
        $region85: #{tpu_custom_call.1} parent=83 // pred_check
          %p981 = pneg %p302
        $region86: #{tpu_custom_call.1} parent=83 // pred_check_branch
          %983 = sbr.rel (%p981) target = $region88
        $region87: #{tpu_custom_call.1} parent=83 // pred_region
          %s984 = sand.u32 %s287, 1
          %s985 = scalar_lea.sflag [#allocation4], %s984
          %s986 = sand.u32 %s287, 1
          %s987 = smul.addr %s986, 8
          %s988 = scalar_lea.vmem [#allocation11], %s987
          %989 = dma.done %s985, 128
        $region88: #{tpu_custom_call.1} parent=83 // pred_fallthru
          _
      $region84: #{tpu_custom_call.1} parent=5 // pred_fallthru
        _
    $region6: #{tpu_custom_call.1} parent=1 // loop_footer
      %s29 = sadd.s32 1, %s25
    $region7: #{tpu_custom_call.1} parent=1 // loop_footer_branch
      %24 = sbr.rel target = $region3
    $region8: #{tpu_custom_call.1} parent=1 // loop_exit
      _
    %990 = vsyncpa [#allocation3], 1
    %s991 = scalar_lea.sflag [#allocation3], 1
    %992 = vsyncpa %s991, 1
    %993 = vsyncpa [#allocation6], 1
    %s994 = scalar_lea.sflag [#allocation6], 1
    %995 = vsyncpa %s994, 1
    %996 = vsyncpa [#allocation9], 1
    %s997 = scalar_lea.sflag [#allocation9], 1
    %998 = vsyncpa %s997, 1
    %999 = vsyncpa [#allocation4], 1
    %s1000 = scalar_lea.sflag [#allocation4], 1
    %1001 = vsyncpa %s1000, 1

</llo_original>
